<compile_context>
chip_gen: v5e
topology: v5e:2x2
jax: 0.10.0
libtpu: 0.0.40
codegen_flags: <defaults>
</compile_context>

<pallas_src>
import math

import numpy as np
import jax
import jax.numpy as jnp
from jax.experimental import pallas as pl
from jax.experimental.pallas import tpu as pltpu


# --------------------------------- kernel ----------------------------------

def _cnn_kernel(x_ref, s_ref, out_ref):
    C, npad = x_ref.shape          # channels, padded lane width (mult. of 128)
    B = out_ref.shape[1]
    C2 = C // 2
    pw = 7 * C + C2 + 4            # packed learned-parameter width

    x = x_ref[...]                 # (C, npad)
    s = s_ref[...]                 # (npad, npad + pw + B) packed constants

    # --- unpack constants (static slices of the single packed slab) ---
    sel = s[:, 0:npad]                                   # (npad, npad) maxpool picker
    w = s[0:C, npad:npad + pw]                           # (C, pw) learned params
    avg = s[:, npad + pw:npad + pw + B]                  # (npad, B) masked 1/L3 mean

    w1s = w[:, 0:3 * C]                                  # (C, 3C) conv1 taps
    b1 = w[:, 3 * C:3 * C + 1]                           # (C, 1)
    w2s = w[:, 3 * C + 1:6 * C + 1]                      # (C, 3C) conv2 taps
    b2 = w[:, 6 * C + 1:6 * C + 2]                       # (C, 1)
    base = 6 * C + 2
    fw1 = w[0:C2, base:base + C]                         # (C/2, C)
    fb1 = w[0:C2, base + C:base + C + 1]                 # (C/2, 1)
    fw2 = w[0:1, base + C + 1:base + C + 1 + C2]         # (1, C/2)
    fb2 = w[0:1, base + C + 1 + C2:base + C + 2 + C2]    # (1, 1)

    def lshift1(v):
        # out[:, j] = v[:, (j + 1) % n]  (jnp.roll semantics, shift == -1 mod n)
        # XLU lane rotate; wrapped/padding columns are junk and are dropped by
        # the sel/avg selection matmuls below.
        n = v.shape[1]
        return pltpu.roll(v, shift=n - 1, axis=1)

    def im2col3(v):
        s1 = lshift1(v)
        return jnp.concatenate([v, s1, lshift1(s1)], axis=0)   # (3C, npad)

    # conv1 (k=3, stride 1, valid) + bias + relu: one MXU push, whole batch.
    h = jnp.maximum(
        jnp.dot(w1s, im2col3(x), preferred_element_type=jnp.float32) + b1, 0.0)

    # maxpool(2, 2): pairwise max with right neighbor, then one-hot compaction
    # (drops conv-"valid" tails, stride-2 gaps and padding lanes in one matmul).
    m = jnp.maximum(h, lshift1(h))
    p = jnp.dot(m, sel, preferred_element_type=jnp.float32)     # (C, npad)

    # conv2 (k=3, stride 1, valid) + bias + relu.
    g = jnp.maximum(
        jnp.dot(w2s, im2col3(p), preferred_element_type=jnp.float32) + b2, 0.0)

    # adaptive avg pool (1): per-sample masked mean via one matmul -> (C, B).
    v = jnp.dot(g, avg, preferred_element_type=jnp.float32)

    # fc1 + relu, fc2 (batch lives in the lane dimension).
    f1 = jnp.maximum(
        jnp.dot(fw1, v, preferred_element_type=jnp.float32) + fb1, 0.0)
    out_ref[...] = jnp.dot(fw2, f1, preferred_element_type=jnp.float32) + fb2


# ------------------------ one-time host-side packing ------------------------

def _build_const_slab(params, B, C, L, npad):
    """Pack learned params + maxpool-selection + masked-average matrices into
    ONE (npad, npad + pw + B) f32 slab (built once on host -> a single DMA)."""
    C2 = C // 2
    L1 = L - 2            # length after conv1 (valid)
    L2 = L1 // 2          # length after maxpool(2, 2)
    L3 = L2 - 2           # length after conv2 (valid) == avg-pool divisor
    BL2 = B * L2
    assert L3 >= 1, f"sequence length too short: L={L} (need L >= 8)"
    assert BL2 <= npad

    p = {k: np.asarray(v, np.float32) for k, v in params.items()}

    def pad_rows(a):
        return np.pad(a, ((0, C - a.shape[0]), (0, 0)))

    wpack = np.concatenate(
        [p['w1'][0], p['w1'][1], p['w1'][2], p['b1'],
         p['w2'][0], p['w2'][1], p['w2'][2], p['b2'],
         pad_rows(p['fw1']), pad_rows(p['fb1']),
         pad_rows(p['fw2']), pad_rows(p['fb2'])], axis=1)        # (C, pw)
    pw = wpack.shape[1]
    assert pw == 7 * C + C2 + 4

    # Maxpool compaction: column c of `sel` picks flattened column
    # (c//L2)*L + 2*(c%L2) (sample-local, stride-2, even positions); every
    # other column (tails, gaps, padding, roll-wrapped columns) gets weight 0.
    r = np.arange(npad)[:, None]
    c = np.arange(npad)[None, :]
    sel = ((c < BL2) & (r == (c // L2) * L + 2 * (c % L2))).astype(np.float32)

    # Adaptive avg pool (1): per-sample mean over the L3 valid conv2 columns;
    # rows >= BL2 (padding / roll-contaminated lanes) are zero.
    rr = np.arange(npad)[:, None]
    bb = np.arange(B)[None, :]
    avg = (((rr < BL2) & ((rr // L2) == bb) & ((rr % L2) < L3))
           .astype(np.float32) / L3)

    slab = np.zeros((npad, npad + pw + B), np.float32)
    slab[:, :npad] = sel
    slab[:C, npad:npad + pw] = wpack
    slab[:, npad + pw:] = avg
    return jnp.asarray(slab)


# -------------------------------- wrapper -----------------------------------

def make_cnn_forward(params, B, C, L):
    """Build a jitted forward pass for a fixed (B, C, L); constants are packed
    once here, outside the per-call path."""
    assert B >= 2, "module's .squeeze() assumes batch > 1"
    assert C % 8 == 0, "channels must be a multiple of 8 (sublane-aligned rolls)"
    assert L >= 8, "need at least one valid position after conv/pool/conv"
    BL = B * L
    npad = ((BL + 127) // 128) * 128     # lane-pad so XLU rolls are (8,128)-aligned
    slab = _build_const_slab(params, B, C, L, npad)

    vmem = pl.BlockSpec(memory_space=pltpu.MemorySpace.VMEM)
    call = pl.pallas_call(
        _cnn_kernel,
        out_shape=jax.ShapeDtypeStruct((1, B), jnp.float32),
        in_specs=[vmem, vmem],
        out_specs=vmem,
    )

    @jax.jit
    def fwd(x, slab_):
        # Layout plumbing: NCL -> (C, B*L) lane-major, zero-padded to npad lanes.
        # (At production sizes drop this transpose by gridding over B with
        #  BlockSpec((1, C, L), lambda b: (b, 0, 0)) instead.)
        x_flat = jnp.transpose(x, (1, 0, 2)).reshape(C, BL).astype(jnp.float32)
        x_pad = jnp.pad(x_flat, ((0, 0), (0, npad - BL)))
        return call(x_pad, slab_).reshape(B, 1)   # module returns (B, 1)

    return lambda x: fwd(x, slab)


# ------------------------------- reference ----------------------------------

def reference_forward(x, p):
    """Plain-JAX reference with identical semantics (for verification)."""
    def conv1d(h, w, b):  # w: (3, Cout, Cin), b: (C, 1)
        lout = h.shape[-1] - 2
        acc = sum(jnp.einsum('oi,bil->bol', w[k], h[:, :, k:k + lout])
                  for k in range(3))
        return acc + b[None, :, :]

    h = jax.nn.relu(conv1d(x, p['w1'], p['b1']))
    l2 = h.shape[-1] // 2
    h = jnp.maximum(h[:, :, 0:2 * l2:2], h[:, :, 1:2 * l2:2])
    h = jax.nn.relu(conv1d(h, p['w2'], p['b2']))
    v = jnp.mean(h, axis=-1)                                   # (B, C) == squeeze
    f1 = jax.nn.relu(v @ p['fw1'].T + p['fb1'][:, 0])
    return f1 @ p['fw2'].T + p['fb2'][:, 0]                    # (B, 1)


# --------------------------------- main --------------------------------------

if __name__ == "__main__":
    # Small shapes consistent with the module: batch=2, in_c=8, seq len=16.
    B, C, L = 2, 8, 16
    key = jax.random.PRNGKey(0)
    ks = jax.random.split(key, 8)

    prior_prob = 0.01
    bias_value = -math.log((1 - prior_prob) / prior_prob)

    params = {
        'w1': jax.random.normal(ks[0], (3, C, C), jnp.float32) * 0.3,
        'b1': jax.random.normal(ks[1], (C, 1), jnp.float32) * 0.1,
        'w2': jax.random.normal(ks[2], (3, C, C), jnp.float32) * 0.3,
        'b2': jax.random.normal(ks[3], (C, 1), jnp.float32) * 0.1,
        'fw1': jax.random.normal(ks[4], (C // 2, C), jnp.float32) * 0.3,
        'fb1': jax.random.normal(ks[5], (C // 2, 1), jnp.float32) * 0.1,
        'fw2': jax.random.normal(ks[6], (1, C // 2), jnp.float32) * 0.3,
        'fb2': jnp.full((1, 1), bias_value, jnp.float32),
    }
    x = jax.random.normal(ks[7], (B, C, L), jnp.float32)

    fwd = make_cnn_forward(params, B, C, L)
    out = jax.block_until_ready(fwd(x))
    ref = reference_forward(x, params)

    assert out.shape == (B, 1), out.shape
    assert jnp.allclose(out, ref, rtol=1e-3, atol=1e-3), (out, ref)
    print("KERNEL_OK")
</pallas_src>

<mosaic_0001>
module attributes {stable_mosaic.version = 11 : i64} {
  func.func @_cnn_kernel(%arg0: memref<8x128xf32, #tpu.memory_space<vmem>>, %arg1: memref<128x194xf32, #tpu.memory_space<vmem>>, %arg2: memref<1x2xf32, #tpu.memory_space<vmem>>) attributes {dimension_semantics = [], scalar_prefetch = 0 : i64, scratch_operands = 0 : i64, tpu.core_type = #tpu.core_type<tc>} {
    %c0 = arith.constant 0 : index
    %c0_0 = arith.constant 0 : index
    %0 = vector.load %arg0[%c0, %c0_0] : memref<8x128xf32, #tpu.memory_space<vmem>>, vector<8x128xf32>
    %c0_1 = arith.constant 0 : index
    %c0_2 = arith.constant 0 : index
    %1 = vector.load %arg1[%c0_1, %c0_2] : memref<128x194xf32, #tpu.memory_space<vmem>>, vector<128x194xf32>
    %2 = vector.extract_strided_slice %1 {offsets = [0, 0], sizes = [128, 128], strides = [1, 1]} : vector<128x194xf32> to vector<128x128xf32>
    %3 = vector.extract_strided_slice %1 {offsets = [0, 128], sizes = [8, 64], strides = [1, 1]} : vector<128x194xf32> to vector<8x64xf32>
    %4 = vector.extract_strided_slice %1 {offsets = [0, 192], sizes = [128, 2], strides = [1, 1]} : vector<128x194xf32> to vector<128x2xf32>
    %5 = vector.extract_strided_slice %3 {offsets = [0, 0], sizes = [8, 24], strides = [1, 1]} : vector<8x64xf32> to vector<8x24xf32>
    %6 = vector.extract_strided_slice %3 {offsets = [0, 24], sizes = [8, 1], strides = [1, 1]} : vector<8x64xf32> to vector<8x1xf32>
    %7 = vector.extract_strided_slice %3 {offsets = [0, 25], sizes = [8, 24], strides = [1, 1]} : vector<8x64xf32> to vector<8x24xf32>
    %8 = vector.extract_strided_slice %3 {offsets = [0, 49], sizes = [8, 1], strides = [1, 1]} : vector<8x64xf32> to vector<8x1xf32>
    %9 = vector.extract_strided_slice %3 {offsets = [0, 50], sizes = [4, 8], strides = [1, 1]} : vector<8x64xf32> to vector<4x8xf32>
    %10 = vector.extract_strided_slice %3 {offsets = [0, 58], sizes = [4, 1], strides = [1, 1]} : vector<8x64xf32> to vector<4x1xf32>
    %11 = vector.extract_strided_slice %3 {offsets = [0, 59], sizes = [1, 4], strides = [1, 1]} : vector<8x64xf32> to vector<1x4xf32>
    %12 = vector.extract_strided_slice %3 {offsets = [0, 63], sizes = [1, 1], strides = [1, 1]} : vector<8x64xf32> to vector<1x1xf32>
    %c127_i32 = arith.constant 127 : i32
    %13 = tpu.dynamic_rotate %0 by %c127_i32 dim 1 : vector<8x128xf32>, i32 -> vector<8x128xf32>
    %c127_i32_3 = arith.constant 127 : i32
    %14 = tpu.dynamic_rotate %13 by %c127_i32_3 dim 1 : vector<8x128xf32>, i32 -> vector<8x128xf32>
    %15 = tpu.concatenate %0, %13, %14 in 0 : vector<8x128xf32>, vector<8x128xf32>, vector<8x128xf32> -> vector<24x128xf32>
    %cst = arith.constant dense<0.000000e+00> : vector<8x128xf32>
    %16 = tpu.matmul %5, %15, %cst {dimension_numbers = #tpu.dot_dimension_numbers<[1], [0], [0], [1], [0, 0, 1, 1], [], []>} : vector<8x24xf32>, vector<24x128xf32>, vector<8x128xf32> -> vector<8x128xf32>
    %17 = vector.broadcast %6 : vector<8x1xf32> to vector<8x128xf32>
    %18 = arith.addf %16, %17 : vector<8x128xf32>
    %cst_4 = arith.constant 0.000000e+00 : f32
    %19 = vector.broadcast %cst_4 : f32 to vector<8x128xf32>
    %20 = arith.maximumf %18, %19 : vector<8x128xf32>
    %c127_i32_5 = arith.constant 127 : i32
    %21 = tpu.dynamic_rotate %20 by %c127_i32_5 dim 1 : vector<8x128xf32>, i32 -> vector<8x128xf32>
    %22 = arith.maximumf %20, %21 : vector<8x128xf32>
    %cst_6 = arith.constant dense<0.000000e+00> : vector<8x128xf32>
    %23 = tpu.matmul %22, %2, %cst_6 {dimension_numbers = #tpu.dot_dimension_numbers<[1], [0], [0], [1], [0, 0, 1, 1], [], []>} : vector<8x128xf32>, vector<128x128xf32>, vector<8x128xf32> -> vector<8x128xf32>
    %c127_i32_7 = arith.constant 127 : i32
    %24 = tpu.dynamic_rotate %23 by %c127_i32_7 dim 1 : vector<8x128xf32>, i32 -> vector<8x128xf32>
    %c127_i32_8 = arith.constant 127 : i32
    %25 = tpu.dynamic_rotate %24 by %c127_i32_8 dim 1 : vector<8x128xf32>, i32 -> vector<8x128xf32>
    %26 = tpu.concatenate %23, %24, %25 in 0 : vector<8x128xf32>, vector<8x128xf32>, vector<8x128xf32> -> vector<24x128xf32>
    %cst_9 = arith.constant dense<0.000000e+00> : vector<8x128xf32>
    %27 = tpu.matmul %7, %26, %cst_9 {dimension_numbers = #tpu.dot_dimension_numbers<[1], [0], [0], [1], [0, 0, 1, 1], [], []>} : vector<8x24xf32>, vector<24x128xf32>, vector<8x128xf32> -> vector<8x128xf32>
    %28 = vector.broadcast %8 : vector<8x1xf32> to vector<8x128xf32>
    %29 = arith.addf %27, %28 : vector<8x128xf32>
    %cst_10 = arith.constant 0.000000e+00 : f32
    %30 = vector.broadcast %cst_10 : f32 to vector<8x128xf32>
    %31 = arith.maximumf %29, %30 : vector<8x128xf32>
    %cst_11 = arith.constant dense<0.000000e+00> : vector<8x2xf32>
    %32 = tpu.matmul %31, %4, %cst_11 {dimension_numbers = #tpu.dot_dimension_numbers<[1], [0], [0], [1], [0, 0, 1, 1], [], []>} : vector<8x128xf32>, vector<128x2xf32>, vector<8x2xf32> -> vector<8x2xf32>
    %cst_12 = arith.constant dense<0.000000e+00> : vector<4x2xf32>
    %33 = tpu.matmul %9, %32, %cst_12 {dimension_numbers = #tpu.dot_dimension_numbers<[1], [0], [0], [1], [0, 0, 1, 1], [], []>} : vector<4x8xf32>, vector<8x2xf32>, vector<4x2xf32> -> vector<4x2xf32>
    %34 = vector.broadcast %10 : vector<4x1xf32> to vector<4x2xf32>
    %35 = arith.addf %33, %34 : vector<4x2xf32>
    %cst_13 = arith.constant 0.000000e+00 : f32
    %36 = vector.broadcast %cst_13 : f32 to vector<4x2xf32>
    %37 = arith.maximumf %35, %36 : vector<4x2xf32>
    %cst_14 = arith.constant dense<0.000000e+00> : vector<1x2xf32>
    %38 = tpu.matmul %11, %37, %cst_14 {dimension_numbers = #tpu.dot_dimension_numbers<[1], [0], [0], [1], [0, 0, 1, 1], [], []>} : vector<1x4xf32>, vector<4x2xf32>, vector<1x2xf32> -> vector<1x2xf32>
    %39 = vector.broadcast %12 : vector<1x1xf32> to vector<1x2xf32>
    %40 = arith.addf %38, %39 : vector<1x2xf32>
    %c0_15 = arith.constant 0 : index
    %c0_16 = arith.constant 0 : index
    %41 = vector.load %arg2[%c0_15, %c0_16] : memref<1x2xf32, #tpu.memory_space<vmem>>, vector<1x2xf32>
    tpu.vector_store %arg2[%c0_15, %c0_16], %40 {strides = array<i32>} : memref<1x2xf32, #tpu.memory_space<vmem>>, vector<1x2xf32>,
    return
  }
}

</mosaic_0001>

<llo_original>
// kernel: fwd.1
$region0: #{fwd.1}
  #allocation0 [shape = 'u32[]', space=smem, size = 0x4, offset = 0x4, fixed_abs, tag = 'smem constant byte address 0x4 - core index']
  #allocation1 [shape = 'u32[72,128]{1,0:T(1,128)}', space=vmem, size = 0x9000, scoped, tag = 'internal scratch']
  %s0 = inlined_call_operand.vmem [shape: f32[8,128], index: 0, kind: input, shape index: {}]
  %s1 = inlined_call_operand.vmem [shape: f32[128,194], index: 1, kind: input, shape index: {}]
  %s2 = inlined_call_operand.hbm [shape: f32[1,2], index: 2, kind: output, shape index: {}]
  %s3 = sld [smem:[#allocation0]]
  $region18: #{fwd.1} parent=0
    _
  %s5 = ssub.s32 1, %s3
  %s6 = scalar_select 0, %s5, %s3
  $region1: #{fwd.1} parent=0
    #allocation2 [shape = 'u8[512]{0}', space=vmem, size = 0x400, scoped, tag = 'output window, operand 0, single buffered']
    #allocation3 [shape = 's32[1]{0}', space=sflag, size = 0x4, scoped, tag = 'scoped memory for fwd.1']
    %7 = vsyncpa [#allocation3], 0
    // Predicated region
    $region2: #{fwd.1} parent=1 // pred_check
      _
    $region3: #{fwd.1} parent=1 // pred_check_branch
      %9 = sbr.rel (0) target = $region5
    $region4: #{fwd.1} parent=1 // pred_region
      _
    $region5: #{fwd.1} parent=1 // pred_fallthru
      _
    // Predicated region
    $region6: #{fwd.1} parent=1 // pred_check
      _
    $region7: #{fwd.1} parent=1 // pred_check_branch
      %11 = sbr.rel (0) target = $region9
    $region8: #{fwd.1} parent=1 // pred_region
      _
    $region9: #{fwd.1} parent=1 // pred_fallthru
      _
    %v12 = vld [vmem:[%s0] sm:$0xff]
    %v13 = vld [vmem:[%s1] sm:$0xff]
    %v14 = vld [vmem:[%s1 + $0x8] sm:$0xff]
    %v15 = vld [vmem:[%s1 + $0x10] sm:$0xff]
    %v16 = vld [vmem:[%s1 + $0x18] sm:$0xff]
    %v17 = vld [vmem:[%s1 + $0x20] sm:$0xff]
    %v18 = vld [vmem:[%s1 + $0x28] sm:$0xff]
    %v19 = vld [vmem:[%s1 + $0x30] sm:$0xff]
    %v20 = vld [vmem:[%s1 + $0x38] sm:$0xff]
    %v21 = vld [vmem:[%s1 + $0x40] sm:$0xff]
    %v22 = vld [vmem:[%s1 + $0x48] sm:$0xff]
    %v23 = vld [vmem:[%s1 + $0x50] sm:$0xff]
    %v24 = vld [vmem:[%s1 + $0x58] sm:$0xff]
    %v25 = vld [vmem:[%s1 + $0x60] sm:$0xff]
    %v26 = vld [vmem:[%s1 + $0x68] sm:$0xff]
    %v27 = vld [vmem:[%s1 + $0x70] sm:$0xff]
    %v28 = vld [vmem:[%s1 + $0x78] sm:$0xff]
    %v29 = vld [vmem:[%s1 + $0x80] sm:$0xff]
    %v30 = vld [vmem:[%s1 + $0x88] sm:$0xff]
    %v31 = vld [vmem:[%s1 + $0x90] sm:$0xff]
    %v32 = vld [vmem:[%s1 + $0x98] sm:$0xff]
    %v33 = vld [vmem:[%s1 + $0xa0] sm:$0xff]
    %v34 = vld [vmem:[%s1 + $0xa8] sm:$0xff]
    %v35 = vld [vmem:[%s1 + $0xb0] sm:$0xff]
    %v36 = vld [vmem:[%s1 + $0xb8] sm:$0xff]
    %v37 = vld [vmem:[%s1 + $0xc0] sm:$0xff]
    %v38 = vld [vmem:[%s1 + $0xc8] sm:$0xff]
    %v39 = vld [vmem:[%s1 + $0xd0] sm:$0xff]
    %v40 = vld [vmem:[%s1 + $0xd8] sm:$0xff]
    %v41 = vld [vmem:[%s1 + $0xe0] sm:$0xff]
    %v42 = vld [vmem:[%s1 + $0xe8] sm:$0xff]
    %v43 = vld [vmem:[%s1 + $0xf0] sm:$0xff]
    %v44 = vld [vmem:[%s1 + $0xf8] sm:$0xff]
    %45 = vrot.lane.b32.xlu0 %v12, 127
    %v46 = vpop.permute.xlu0 %45
    %47 = vrot.lane.b32.xlu0 %v46, 127
    %v48 = vpop.permute.xlu0 %47
    %50 = vset.pattern.permute.xlu0 24
    %51 = vperm.xlu0 %50, %v14
    %v52 = vpop.permute.xlu0 %51
    %vm54 = vcmask 195584
    %v55 = vsel %vm54, %v14, 0
    %57 = vmatpush.msra.mxu0 0.0
    %58 = vmatpush.msra.mxu0 0.0
    %59 = vmatpush.msra.mxu0 0.0
    %60 = vmatpush.msra.mxu0 0.0
    %61 = vmatpush.msra.mxu0 0.0
    %62 = vmatpush.msra.mxu0 0.0
    %63 = vmatpush.msra.mxu0 0.0
    %64 = vmatpush.msra.mxu0 0.0
    %65 = vmatpush.msra.mxu0 0.0
    %66 = vmatpush.msra.mxu0 0.0
    %67 = vmatpush.msra.mxu0 0.0
    %68 = vmatpush.msra.mxu0 0.0
    %69 = vmatpush.msra.mxu0 0.0
    %70 = vmatpush.msra.mxu0 %v48
    %71 = vmatpush.msra.mxu0 %v46
    %72 = vmatpush.msra.mxu0 %v12
    %73 = vmatmul.f32.gmra.mxu0 %v55
    %v74 = vpop.f32.mrf.mxu0
    %v75 = vadd.f32 %v52, %v74
    %76 = vdwg.mxu0
    %v77 = vmax.f32 %v75, 0.0
    %78 = vrot.lane.b32.xlu0 %v77, 127
    %v79 = vpop.permute.xlu0 %78
    %v80 = vmax.f32 %v77, %v79
    %81 = vmatpush.msra.mxu0 %v43
    %82 = vmatpush.msra.mxu0 %v41
    %83 = vmatpush.msra.mxu0 %v39
    %84 = vmatpush.msra.mxu0 %v37
    %85 = vmatpush.msra.mxu0 %v35
    %86 = vmatpush.msra.mxu0 %v33
    %87 = vmatpush.msra.mxu0 %v31
    %88 = vmatpush.msra.mxu0 %v29
    %89 = vmatpush.msra.mxu0 %v27
    %90 = vmatpush.msra.mxu0 %v25
    %91 = vmatpush.msra.mxu0 %v23
    %92 = vmatpush.msra.mxu0 %v21
    %93 = vmatpush.msra.mxu0 %v19
    %94 = vmatpush.msra.mxu0 %v17
    %95 = vmatpush.msra.mxu0 %v15
    %96 = vmatpush.msra.mxu0 %v13
    %97 = vmatmul.f32.gmra.mxu0 %v80
    %v98 = vpop.f32.mrf.mxu0
    %v99 = vadd.f32 0.0, %v98
    %100 = vdwg.mxu0
    %101 = vrot.lane.b32.xlu0 %v99, 127
    %v102 = vpop.permute.xlu0 %101
    %103 = vrot.lane.b32.xlu0 %v102, 127
    %v104 = vpop.permute.xlu0 %103
    %105 = vset.pattern.permute.xlu0 49
    %106 = vperm.xlu0 %105, %v14
    %v107 = vpop.permute.xlu0 %106
    %109 = vrot.lane.b32.xlu0 %v14, 103
    %v110 = vpop.permute.xlu0 %109
    %v111 = vsel %vm54, %v110, 0
    %113 = vmatpush.msra.mxu0 0.0
    %114 = vmatpush.msra.mxu0 0.0
    %115 = vmatpush.msra.mxu0 0.0
    %116 = vmatpush.msra.mxu0 0.0
    %117 = vmatpush.msra.mxu0 0.0
    %118 = vmatpush.msra.mxu0 0.0
    %119 = vmatpush.msra.mxu0 0.0
    %120 = vmatpush.msra.mxu0 0.0
    %121 = vmatpush.msra.mxu0 0.0
    %122 = vmatpush.msra.mxu0 0.0
    %123 = vmatpush.msra.mxu0 0.0
    %124 = vmatpush.msra.mxu0 0.0
    %125 = vmatpush.msra.mxu0 0.0
    %126 = vmatpush.msra.mxu0 %v104
    %127 = vmatpush.msra.mxu0 %v102
    %128 = vmatpush.msra.mxu0 %v99
    %129 = vmatmul.f32.gmra.mxu0 %v111
    %v130 = vpop.f32.mrf.mxu0
    %v131 = vadd.f32 %v107, %v130
    %132 = vdwg.mxu0
    %v133 = vmax.f32 %v131, 0.0
    %149 = vrot.lane.b32.xlu0 %v14, 64
    %v150 = vpop.permute.xlu0 %149
    %151 = vrot.lane.b32.xlu0 %v16, 64
    %v152 = vpop.permute.xlu0 %151
    %153 = vrot.lane.b32.xlu0 %v18, 64
    %v154 = vpop.permute.xlu0 %153
    %155 = vrot.lane.b32.xlu0 %v20, 64
    %v156 = vpop.permute.xlu0 %155
    %157 = vrot.lane.b32.xlu0 %v22, 64
    %v158 = vpop.permute.xlu0 %157
    %159 = vrot.lane.b32.xlu0 %v24, 64
    %v160 = vpop.permute.xlu0 %159
    %161 = vrot.lane.b32.xlu0 %v26, 64
    %v162 = vpop.permute.xlu0 %161
    %163 = vrot.lane.b32.xlu0 %v28, 64
    %v164 = vpop.permute.xlu0 %163
    %165 = vrot.lane.b32.xlu0 %v30, 64
    %v166 = vpop.permute.xlu0 %165
    %167 = vrot.lane.b32.xlu0 %v32, 64
    %v168 = vpop.permute.xlu0 %167
    %169 = vrot.lane.b32.xlu0 %v34, 64
    %v170 = vpop.permute.xlu0 %169
    %171 = vrot.lane.b32.xlu0 %v36, 64
    %v172 = vpop.permute.xlu0 %171
    %173 = vrot.lane.b32.xlu0 %v38, 64
    %v174 = vpop.permute.xlu0 %173
    %175 = vrot.lane.b32.xlu0 %v40, 64
    %v176 = vpop.permute.xlu0 %175
    %177 = vrot.lane.b32.xlu0 %v42, 64
    %v178 = vpop.permute.xlu0 %177
    %179 = vrot.lane.b32.xlu0 %v44, 64
    %v180 = vpop.permute.xlu0 %179
    %197 = vmatpush.msra.mxu0 %v180
    %198 = vmatpush.msra.mxu0 %v178
    %199 = vmatpush.msra.mxu0 %v176
    %200 = vmatpush.msra.mxu0 %v174
    %201 = vmatpush.msra.mxu0 %v172
    %202 = vmatpush.msra.mxu0 %v170
    %203 = vmatpush.msra.mxu0 %v168
    %204 = vmatpush.msra.mxu0 %v166
    %205 = vmatpush.msra.mxu0 %v164
    %206 = vmatpush.msra.mxu0 %v162
    %207 = vmatpush.msra.mxu0 %v160
    %208 = vmatpush.msra.mxu0 %v158
    %209 = vmatpush.msra.mxu0 %v156
    %210 = vmatpush.msra.mxu0 %v154
    %211 = vmatpush.msra.mxu0 %v152
    %212 = vmatpush.msra.mxu0 %v150
    %213 = vmatmul.f32.gmra.mxu0 %v133
    %v214 = vpop.f32.mrf.mxu0
    %v215 = vadd.f32 0.0, %v214
    %216 = vdwg.mxu0
    %217 = vset.pattern.permute.xlu0 58
    %218 = vperm.xlu0 %217, %v14
    %v219 = vpop.permute.xlu0 %218
    %221 = vrot.lane.b32.xlu0 %v14, 78
    %v222 = vpop.permute.xlu0 %221
    %vm223 = vcmask 64512
    %v224 = vsel %vm223, %v222, 0
    %226 = vmatpush.msra.mxu0 0.0
    %227 = vmatpush.msra.mxu0 0.0
    %228 = vmatpush.msra.mxu0 0.0
    %229 = vmatpush.msra.mxu0 0.0
    %230 = vmatpush.msra.mxu0 0.0
    %231 = vmatpush.msra.mxu0 0.0
    %232 = vmatpush.msra.mxu0 0.0
    %233 = vmatpush.msra.mxu0 0.0
    %234 = vmatpush.msra.mxu0 0.0
    %235 = vmatpush.msra.mxu0 0.0
    %236 = vmatpush.msra.mxu0 0.0
    %237 = vmatpush.msra.mxu0 0.0
    %238 = vmatpush.msra.mxu0 0.0
    %239 = vmatpush.msra.mxu0 0.0
    %240 = vmatpush.msra.mxu0 0.0
    %241 = vmatpush.msra.mxu0 %v215
    %242 = vmatmul.f32.gmra.mxu0 %v224
    %v243 = vpop.f32.mrf.mxu0
    %v244 = vadd.f32 %v219, %v243
    %245 = vdwg.mxu0
    %v246 = vmax.f32 %v244, 0.0
    %247 = vset.pattern.permute.xlu0 63
    %248 = vperm.xlu0 %247, %v14
    %v249 = vpop.permute.xlu0 %248
    %251 = vrot.lane.b32.xlu0 %v14, 69
    %v252 = vpop.permute.xlu0 %251
    %vm253 = vcmask 31744
    %v254 = vsel %vm253, %v252, 0
    %vm256 = vcmask 1043456
    %v258 = vsel %vm256, %v246, 0
    %260 = vmatpush.msra.mxu0 0.0
    %261 = vmatpush.msra.mxu0 0.0
    %262 = vmatpush.msra.mxu0 0.0
    %263 = vmatpush.msra.mxu0 0.0
    %264 = vmatpush.msra.mxu0 0.0
    %265 = vmatpush.msra.mxu0 0.0
    %266 = vmatpush.msra.mxu0 0.0
    %267 = vmatpush.msra.mxu0 0.0
    %268 = vmatpush.msra.mxu0 0.0
    %269 = vmatpush.msra.mxu0 0.0
    %270 = vmatpush.msra.mxu0 0.0
    %271 = vmatpush.msra.mxu0 0.0
    %272 = vmatpush.msra.mxu0 0.0
    %273 = vmatpush.msra.mxu0 0.0
    %274 = vmatpush.msra.mxu0 0.0
    %275 = vmatpush.msra.mxu0 %v258
    %276 = vmatmul.f32.gmra.mxu0 %v254
    %v277 = vpop.f32.mrf.mxu0
    %v278 = vadd.f32 %v249, %v277
    %279 = vdwg.mxu0
    %vm280 = vcmask 8192
    %281 = vst.msk [vmem:[#allocation2] sm:$0x1] %vm280, %v278
    // Predicated region
    $region10: #{fwd.1} parent=1 // pred_check
      _
    $region11: #{fwd.1} parent=1 // pred_check_branch
      %283 = sbr.rel (0) target = $region13
    $region12: #{fwd.1} parent=1 // pred_region
      %285 = vsyncadd [#allocation3], 0
      %s287 = sshll.u32 [#allocation2], 4
      %s288 = int_to_ptr.vmem [resolvable:$true] %s287
      %s289 = sshll.u32 %s2, 4
      %s290 = int_to_ptr.hbm [resolvable:$true] %s289
      %292 = dma.vmem_to_hbm [thread:$0]  %s288, 16, %s290, [#allocation3]
    $region13: #{fwd.1} parent=1 // pred_fallthru
      _
    // Predicated region
    $region14: #{fwd.1} parent=1 // pred_check
      _
    $region15: #{fwd.1} parent=1 // pred_check_branch
      %294 = sbr.rel (0) target = $region17
    $region16: #{fwd.1} parent=1 // pred_region
      %296 = dma.done [#allocation3], 16
    $region17: #{fwd.1} parent=1 // pred_fallthru
      _
    %297 = vsyncpa [#allocation3], 1

</llo_original>
